<compile_context>
chip_gen: v5e
topology: v5e:2x2
jax: 0.10.0
libtpu: 0.0.40
codegen_flags: <defaults>
</compile_context>

<pallas_src>
import functools

import jax
import jax.numpy as jnp
from jax.experimental import pallas as pl
from jax.experimental.pallas import tpu as pltpu

LN_EPS = 1e-5                      # torch.nn.LayerNorm default
_INV_SQRT2 = 0.7071067811865475    # 1/sqrt(2) for exact (erf) GELU


# --------------------------------------------------------------------------- #
# Kernel bodies
# --------------------------------------------------------------------------- #

def _layer_norm(x_f32, gamma, beta, dim):
    """LayerNorm over the (possibly zero-padded) last axis; exact w.r.t. `dim`."""
    mean = jnp.sum(x_f32, axis=-1, keepdims=True) * (1.0 / dim)
    centered = x_f32 - mean
    if x_f32.shape[-1] != dim:
        # Mask padded feature columns so they don't pollute the variance.
        col = jax.lax.broadcasted_iota(jnp.int32, x_f32.shape, 1)
        centered = jnp.where(col < dim, centered, 0.0)
    var = jnp.sum(centered * centered, axis=-1, keepdims=True) * (1.0 / dim)
    return centered * jax.lax.rsqrt(var + LN_EPS) * gamma + beta


def _gelu_exact(h):
    # torch.nn.GELU() default (erf based).
    return 0.5 * h * (1.0 + jax.lax.erf(h * _INV_SQRT2))


def _ffn_kernel_fused(x_ref, g_ref, beta_ref, w1_ref, b1_ref, w2_ref, b2_ref,
                      o_ref, *, dim):
    """Fast path: full hidden axis resident (grid = (token_tiles,)).

    No accumulator scratch, no LayerNorm cache: LN -> W1 -> GELU -> W2 -> out
    in one shot per token tile.  W1/W2 block indices are constant, so their
    HBM->VMEM DMA happens exactly once for the whole grid.
    """
    xn = _layer_norm(x_ref[...].astype(jnp.float32), g_ref[...], beta_ref[...], dim)
    h = jnp.dot(xn.astype(w1_ref.dtype), w1_ref[...],
                preferred_element_type=jnp.float32) + b1_ref[...]
    h = _gelu_exact(h)
    # Dropout(p=0.0) is the identity.
    out = jnp.dot(h.astype(w2_ref.dtype), w2_ref[...],
                  preferred_element_type=jnp.float32) + b2_ref[...]
    o_ref[...] = out.astype(o_ref.dtype)


def _ffn_kernel_acc(x_ref, g_ref, beta_ref, w1_ref, b1_ref, w2_ref, b2_ref,
                    o_ref, xn_ref, acc_ref, *, dim):
    """General path: hidden axis tiled (grid = (token_tiles, hidden_tiles)).

    x_ref:  (TM, DIM_P)   token tile (constant across the hidden axis)
    w1_ref: (DIM_P, TH)   column slab of W1;  b1_ref: (1, TH)
    w2_ref: (TH, DIM_P)   row slab of W2;     b2_ref: (1, DIM_P)
    xn_ref: (TM, DIM_P)   cached LayerNorm output (matmul dtype)
    acc_ref:(TM, DIM_P)   f32 accumulator for the second matmul
    """
    j = pl.program_id(1)

    @pl.when(j == 0)
    def _():
        xn = _layer_norm(x_ref[...].astype(jnp.float32), g_ref[...],
                         beta_ref[...], dim)
        xn_ref[...] = xn.astype(xn_ref.dtype)
        acc_ref[...] = jnp.zeros_like(acc_ref)

    # Linear(dim -> hidden) partial (this hidden-column slab), GELU, then
    # Linear(hidden -> dim) partial accumulated in f32.
    h = jnp.dot(xn_ref[...], w1_ref[...],
                preferred_element_type=jnp.float32) + b1_ref[...]
    h = _gelu_exact(h)
    acc_ref[...] += jnp.dot(h.astype(w2_ref.dtype), w2_ref[...],
                            preferred_element_type=jnp.float32)

    @pl.when(j == pl.num_programs(1) - 1)
    def _():
        o_ref[...] = (acc_ref[...] + b2_ref[...]).astype(o_ref.dtype)


# --------------------------------------------------------------------------- #
# Planning helpers
# --------------------------------------------------------------------------- #

def _round_up(n, m):
    return ((n + m - 1) // m) * m


def _pad2d(a, rows, cols):
    pr, pc = rows - a.shape[0], cols - a.shape[1]
    if pr == 0 and pc == 0:
        return a
    return jnp.pad(a, ((0, pr), (0, pc)))


@functools.lru_cache(maxsize=None)
def _vmem_capacity_bytes():
    """Per-core VMEM capacity; conservative 64 MiB fallback (v7x-sized)."""
    try:
        info = pltpu.get_tpu_info()
        cap = getattr(info, "vmem_capacity_bytes", None)
        if cap:
            return int(cap)
    except Exception:
        pass
    return 64 << 20


def _probe_kernel(x_ref, o_ref):
    o_ref[...] = x_ref[...] + 1.0


@functools.lru_cache(maxsize=None)
def _single_buffer_supported():
    """True iff pipeline_mode=pl.Buffered(1) lowers & runs on this backend."""
    try:
        spec = pl.BlockSpec((8, 128), lambda i: (0, 0),
                            pipeline_mode=pl.Buffered(1))
        f = pl.pallas_call(
            _probe_kernel,
            out_shape=jax.ShapeDtypeStruct((8, 128), jnp.float32),
            grid=(2,),
            in_specs=[spec],
            out_specs=pl.BlockSpec((8, 128), lambda i: (0, 0)),
        )
        out = jax.block_until_ready(f(jnp.zeros((8, 128), jnp.float32)))
        return bool(jnp.all(out == 1.0))
    except Exception:
        return False


def _pick_hidden_tile(dim_p, hid_p, w_bytes, budget, resident_bufs):
    """Pick the hidden-axis tile.

    Prefer full residency (th == hid_p, weights DMA'd once for the whole grid).
    Otherwise: largest divisor of hid_p that fits `budget` with double-buffered
    slabs, preferring multiples of 256 (v6e/v7x 256x256 MXU) over 128.
    """
    def fits(th, bufs):
        return bufs * 2 * dim_p * th * w_bytes <= budget

    if fits(hid_p, resident_bufs):
        return hid_p
    for step in (256, 128):
        best = 0
        th = step
        while th < hid_p:
            if hid_p % th == 0 and fits(th, 2):
                best = th
            th += step
        if best:
            return best
    return 128


# --------------------------------------------------------------------------- #
# pallas_call wrapper (jitted per static plan)
# --------------------------------------------------------------------------- #

@functools.partial(
    jax.jit,
    static_argnames=("tm_eff", "th", "dim_p", "hid_p", "tokens_p",
                     "mm_name", "single_buf", "vmem_limit"))
def _ffn_call(x, gamma, beta, w1, b1, w2, b2, *, tm_eff, th, dim_p, hid_p,
              tokens_p, mm_name, single_buf, vmem_limit):
    B, N, dim = x.shape
    hidden = w1.shape[1]
    tokens = B * N
    mm_dtype = jnp.dtype(mm_name)

    # Zero-pad to lane-dense shapes (exact: masked LN variance, zero padded
    # weight rows/cols, padded outputs sliced off).
    x2 = _pad2d(x.reshape(tokens, dim), tokens_p, dim_p)
    gamma2 = _pad2d(gamma.astype(jnp.float32).reshape(1, dim), 1, dim_p)
    beta2 = _pad2d(beta.astype(jnp.float32).reshape(1, dim), 1, dim_p)
    w1_p = _pad2d(w1, dim_p, hid_p).astype(mm_dtype)
    b1_p = _pad2d(b1.astype(jnp.float32).reshape(1, hidden), 1, hid_p)
    w2_p = _pad2d(w2, hid_p, dim_p).astype(mm_dtype)
    b2_p = _pad2d(b2.astype(jnp.float32).reshape(1, dim), 1, dim_p)

    def inv_spec(shape, imap):
        # Grid-invariant block: single-buffer it when supported (saves VMEM;
        # Pallas already DMAs it only once because the block index is constant).
        if single_buf:
            return pl.BlockSpec(shape, imap, pipeline_mode=pl.Buffered(1))
        return pl.BlockSpec(shape, imap)

    if th == hid_p:
        # ---- fast path: weights fully resident, no reduction axis ----
        grid = (tokens_p // tm_eff,)
        in_specs = [
            pl.BlockSpec((tm_eff, dim_p), lambda i: (i, 0)),   # x tile
            inv_spec((1, dim_p), lambda i: (0, 0)),            # gamma
            inv_spec((1, dim_p), lambda i: (0, 0)),            # beta
            inv_spec((dim_p, hid_p), lambda i: (0, 0)),        # W1 (resident)
            inv_spec((1, hid_p), lambda i: (0, 0)),            # b1
            inv_spec((hid_p, dim_p), lambda i: (0, 0)),        # W2 (resident)
            inv_spec((1, dim_p), lambda i: (0, 0)),            # b2
        ]
        out_specs = pl.BlockSpec((tm_eff, dim_p), lambda i: (i, 0))
        kernel = functools.partial(_ffn_kernel_fused, dim=dim)
        scratch_shapes = []
        dims_sem = ("parallel",)
    else:
        # ---- general path: hidden axis tiled, reduction axis last ----
        # NOTE: if this path is HBM-bound on v6e, pl.Buffered(3) on the W1/W2
        # specs (VMEM permitting) would deepen weight prefetch further.
        grid = (tokens_p // tm_eff, hid_p // th)
        in_specs = [
            pl.BlockSpec((tm_eff, dim_p), lambda i, j: (i, 0)),  # x tile
            inv_spec((1, dim_p), lambda i, j: (0, 0)),           # gamma
            inv_spec((1, dim_p), lambda i, j: (0, 0)),           # beta
            pl.BlockSpec((dim_p, th), lambda i, j: (0, j)),      # W1 slab
            pl.BlockSpec((1, th), lambda i, j: (0, j)),          # b1 slab
            pl.BlockSpec((th, dim_p), lambda i, j: (j, 0)),      # W2 slab
            inv_spec((1, dim_p), lambda i, j: (0, 0)),           # b2
        ]
        out_specs = pl.BlockSpec((tm_eff, dim_p), lambda i, j: (i, 0))
        kernel = functools.partial(_ffn_kernel_acc, dim=dim)
        scratch_shapes = [pltpu.VMEM((tm_eff, dim_p), mm_dtype),     # LN cache
                          pltpu.VMEM((tm_eff, dim_p), jnp.float32)]  # f32 acc
        dims_sem = ("parallel", "arbitrary")

    out = pl.pallas_call(
        kernel,
        out_shape=jax.ShapeDtypeStruct((tokens_p, dim_p), x.dtype),
        grid_spec=pltpu.PrefetchScalarGridSpec(
            num_scalar_prefetch=0,
            grid=grid,
            in_specs=in_specs,
            out_specs=out_specs,
            scratch_shapes=scratch_shapes,
        ),
        compiler_params=pltpu.CompilerParams(
            dimension_semantics=dims_sem,
            vmem_limit_bytes=vmem_limit,
        ),
    )(x2, gamma2, beta2, w1_p, b1_p, w2_p, b2_p)

    return out[:tokens, :dim].reshape(B, N, dim)


# --------------------------------------------------------------------------- #
# Public entry point (Python-level planning, then jitted pallas_call)
# --------------------------------------------------------------------------- #

def feed_forward(x, gamma, beta, w1, b1, w2, b2, *, tm=512,
                 matmul_dtype=jnp.bfloat16, force_hidden_tile=None):
    """x: (B, N, dim). w1: (dim, hidden), w2: (hidden, dim) in (in, out) layout."""
    B, N, dim = x.shape
    hidden = w1.shape[1]
    tokens = B * N

    mm_dtype = jnp.dtype(matmul_dtype)
    w_bytes = mm_dtype.itemsize
    x_bytes = jnp.dtype(x.dtype).itemsize

    dim_p = _round_up(dim, 128)     # lane-dense feature axis
    hid_p = _round_up(hidden, 128)  # lane-dense hidden axis

    vmem_cap = _vmem_capacity_bytes()
    vmem_max = int(0.85 * vmem_cap)            # leave headroom (64 MiB on v7x)
    single_buf = _single_buffer_supported()

    # ---- token tile: large & 256-aligned (v6e/v7x MXU), clamped to tokens ----
    tm_al = _round_up(tm, 256) if tm >= 256 else _round_up(tm, 8)
    tm_eff = max(8, min(tm_al, _round_up(tokens, 8)))

    def nonweight_bytes(tm_e):
        return (2 * tm_e * dim_p * x_bytes       # x tiles (double buffered)
                + 2 * tm_e * dim_p * x_bytes     # out tiles (double buffered)
                + tm_e * dim_p * (w_bytes + 4)   # xn cache + f32 accumulator
                + 2 * tm_e * hid_p * 4)          # in-flight f32 hidden intermediates

    # Keep the activation footprint within ~half of VMEM (matters on v7x).
    while tm_eff > 256 and nonweight_bytes(tm_eff) > vmem_max // 2:
        tm_eff = _round_up(tm_eff // 2, 256)

    # Ensure >= 2 token tiles when tokens allow, so the "parallel" axis can be
    # sharded across v7x's two TensorCores (near-free elsewhere).
    if _round_up(tokens, tm_eff) // tm_eff < 2 and tokens >= 16:
        tm_eff = _round_up((tokens + 1) // 2, 8)
        if tm_eff >= 256:
            tm_eff = _round_up(tm_eff, 256)

    tokens_p = _round_up(tokens, tm_eff)

    # ---- hidden tile: prefer full weight residency ----
    weight_budget = max(4 << 20, vmem_max - nonweight_bytes(tm_eff) - (2 << 20))
    resident_bufs = 1 if single_buf else 2
    if force_hidden_tile is not None:
        th = int(force_hidden_tile)
        assert th % 128 == 0 and hid_p % th == 0
    else:
        th = _pick_hidden_tile(dim_p, hid_p, w_bytes, weight_budget, resident_bufs)

    # ---- explicit VMEM request ----
    weight_bufs = resident_bufs if th == hid_p else 2
    need = (nonweight_bytes(tm_eff)
            + weight_bufs * 2 * dim_p * th * w_bytes   # W1 + W2 slabs
            + 8 * (dim_p + hid_p) * 4)                 # biases / LN params
    vmem_limit = int(min(max(int(need * 1.25) + (2 << 20), 16 << 20), vmem_max))

    return _ffn_call(x, gamma, beta, w1, b1, w2, b2,
                     tm_eff=tm_eff, th=th, dim_p=dim_p, hid_p=hid_p,
                     tokens_p=tokens_p, mm_name=mm_dtype.name,
                     single_buf=single_buf, vmem_limit=vmem_limit)


# --------------------------------------------------------------------------- #
# Reference & test
# --------------------------------------------------------------------------- #

def _reference(x, gamma, beta, w1, b1, w2, b2):
    xf = x.astype(jnp.float32)
    mean = jnp.mean(xf, axis=-1, keepdims=True)
    var = jnp.mean((xf - mean) ** 2, axis=-1, keepdims=True)
    xn = (xf - mean) * jax.lax.rsqrt(var + LN_EPS) * gamma + beta
    h = xn @ w1 + b1
    h = 0.5 * h * (1.0 + jax.lax.erf(h * _INV_SQRT2))
    return (h @ w2 + b2).astype(x.dtype)


def _make_params(key, dim, hidden):
    k_g, k_bt, k_w1, k_b1, k_w2, k_b2 = jax.random.split(key, 6)
    gamma = 1.0 + 0.1 * jax.random.normal(k_g, (dim,), jnp.float32)
    beta = 0.1 * jax.random.normal(k_bt, (dim,), jnp.float32)
    w1 = jax.random.normal(k_w1, (dim, hidden), jnp.float32) * (1.0 / dim ** 0.5)
    b1 = 0.01 * jax.random.normal(k_b1, (hidden,), jnp.float32)
    w2 = jax.random.normal(k_w2, (hidden, dim), jnp.float32) * (1.0 / hidden ** 0.5)
    b2 = 0.01 * jax.random.normal(k_b2, (dim,), jnp.float32)
    return gamma, beta, w1, b1, w2, b2


if __name__ == "__main__":
    key = jax.random.PRNGKey(0)
    k_x, k_p, k_x2, k_p2 = jax.random.split(key, 4)

    # ---- config 1: small FFN, fused (weights-resident) path ----
    B, N, dim, hidden = 2, 8, 32, 64
    x = jax.random.normal(k_x, (B, N, dim), dtype=jnp.float32)
    params = _make_params(k_p, dim, hidden)
    ref = _reference(x, *params)

    out_bf16 = jax.block_until_ready(feed_forward(x, *params))
    assert out_bf16.shape == (B, N, dim)
    assert jnp.allclose(out_bf16, ref, atol=5e-2, rtol=5e-2), "bf16 path mismatch"

    out_f32 = jax.block_until_ready(
        feed_forward(x, *params, matmul_dtype=jnp.float32))
    assert jnp.allclose(out_f32, ref, atol=1e-3, rtol=1e-3), "f32 path mismatch"

    # ---- config 2: force the tiled-hidden (accumulator) path ----
    dim2, hidden2 = 32, 256
    x2 = jax.random.normal(k_x2, (B, N, dim2), dtype=jnp.float32)
    params2 = _make_params(k_p2, dim2, hidden2)
    ref2 = _reference(x2, *params2)
    out_acc = jax.block_until_ready(
        feed_forward(x2, *params2, matmul_dtype=jnp.float32,
                     force_hidden_tile=128))
    assert jnp.allclose(out_acc, ref2, atol=1e-3, rtol=1e-3), "acc path mismatch"

    print("KERNEL_OK")
</pallas_src>

<mosaic_0001>
module attributes {stable_mosaic.version = 11 : i64} {
  func.func @_probe_kernel(%arg0: i32, %arg1: memref<8x128xf32, #tpu.memory_space<vmem>>, %arg2: memref<8x128xf32, #tpu.memory_space<vmem>>) attributes {dimension_semantics = [#tpu.dimension_semantics<arbitrary>], iteration_bounds = array<i64: 2>, scalar_prefetch = 0 : i64, scratch_operands = 0 : i64, tpu.core_type = #tpu.core_type<tc>, window_params = [{pipeline_mode = #tpu.pipeline_mode<synchronous>, transform_indices = @transform_0, window_bounds = array<i64: 8, 128>}, {pipeline_mode = #tpu.pipeline_mode<synchronous>, transform_indices = @transform_1, window_bounds = array<i64: 8, 128>}]} {
    %c0 = arith.constant 0 : index
    %c0_0 = arith.constant 0 : index
    %0 = vector.load %arg1[%c0, %c0_0] : memref<8x128xf32, #tpu.memory_space<vmem>>, vector<8x128xf32>
    %cst = arith.constant 1.000000e+00 : f32
    %1 = vector.broadcast %cst : f32 to vector<8x128xf32>
    %2 = arith.addf %0, %1 : vector<8x128xf32>
    %c0_1 = arith.constant 0 : index
    %c0_2 = arith.constant 0 : index
    %3 = vector.load %arg2[%c0_1, %c0_2] : memref<8x128xf32, #tpu.memory_space<vmem>>, vector<8x128xf32>
    tpu.vector_store %arg2[%c0_1, %c0_2], %2 {strides = array<i32>} : memref<8x128xf32, #tpu.memory_space<vmem>>, vector<8x128xf32>,
    return
  }
  func.func @transform_0(%arg0: i32) -> (i32, i32) {
    %c0_i32 = arith.constant 0 : i32
    %c0_i32_0 = arith.constant 0 : i32
    %c0_i32_1 = arith.constant 0 : i32
    return %c0_i32, %c0_i32_0 : i32, i32
  }
  func.func @transform_1(%arg0: i32) -> (i32, i32) {
    %c0_i32 = arith.constant 0 : i32
    %c0_i32_0 = arith.constant 0 : i32
    %c0_i32_1 = arith.constant 0 : i32
    return %c0_i32, %c0_i32_0 : i32, i32
  }
}

module attributes {stable_mosaic.version = 11 : i64} {
  func.func @_ffn_kernel_fused(%arg0: i32, %arg1: memref<8x128xf32, #tpu.memory_space<vmem>>, %arg2: memref<1x128xf32, #tpu.memory_space<vmem>>, %arg3: memref<1x128xf32, #tpu.memory_space<vmem>>, %arg4: memref<128x128xbf16, #tpu.memory_space<vmem>>, %arg5: memref<1x128xf32, #tpu.memory_space<vmem>>, %arg6: memref<128x128xbf16, #tpu.memory_space<vmem>>, %arg7: memref<1x128xf32, #tpu.memory_space<vmem>>, %arg8: memref<8x128xf32, #tpu.memory_space<vmem>>) attributes {dimension_semantics = [#tpu.dimension_semantics<parallel>], iteration_bounds = array<i64: 2>, scalar_prefetch = 0 : i64, scratch_operands = 0 : i64, tpu.core_type = #tpu.core_type<tc>, window_params = [{transform_indices = @transform_0, window_bounds = array<i64: 8, 128>}, {pipeline_mode = #tpu.pipeline_mode<synchronous>, transform_indices = @transform_1, window_bounds = array<i64: 1, 128>}, {pipeline_mode = #tpu.pipeline_mode<synchronous>, transform_indices = @transform_2, window_bounds = array<i64: 1, 128>}, {pipeline_mode = #tpu.pipeline_mode<synchronous>, transform_indices = @transform_3, window_bounds = array<i64: 128, 128>}, {pipeline_mode = #tpu.pipeline_mode<synchronous>, transform_indices = @transform_4, window_bounds = array<i64: 1, 128>}, {pipeline_mode = #tpu.pipeline_mode<synchronous>, transform_indices = @transform_5, window_bounds = array<i64: 128, 128>}, {pipeline_mode = #tpu.pipeline_mode<synchronous>, transform_indices = @transform_6, window_bounds = array<i64: 1, 128>}, {transform_indices = @transform_7, window_bounds = array<i64: 8, 128>}]} {
    %c0 = arith.constant 0 : index
    %c0_0 = arith.constant 0 : index
    %0 = vector.load %arg1[%c0, %c0_0] : memref<8x128xf32, #tpu.memory_space<vmem>>, vector<8x128xf32>
    %c0_1 = arith.constant 0 : index
    %c0_2 = arith.constant 0 : index
    %1 = vector.load %arg2[%c0_1, %c0_2] : memref<1x128xf32, #tpu.memory_space<vmem>>, vector<1x128xf32>
    %c0_3 = arith.constant 0 : index
    %c0_4 = arith.constant 0 : index
    %2 = vector.load %arg3[%c0_3, %c0_4] : memref<1x128xf32, #tpu.memory_space<vmem>>, vector<1x128xf32>
    %cst = arith.constant dense<0.000000e+00> : vector<8xf32>
    %3 = vector.multi_reduction <add>, %0, %cst [1] : vector<8x128xf32> to vector<8xf32>
    %4 = vector.shape_cast %3 : vector<8xf32> to vector<8x1xf32>
    %cst_5 = arith.constant 3.125000e-02 : f32
    %5 = vector.broadcast %cst_5 : f32 to vector<8x1xf32>
    %6 = arith.mulf %4, %5 : vector<8x1xf32>
    %7 = vector.broadcast %6 : vector<8x1xf32> to vector<8x128xf32>
    %8 = arith.subf %0, %7 : vector<8x128xf32>
    %9 = tpu.iota {dimensions = array<i32: 1>} : vector<8x128xi32>
    %c32_i32 = arith.constant 32 : i32
    %10 = vector.broadcast %c32_i32 : i32 to vector<8x128xi32>
    %11 = arith.cmpi slt, %9, %10 : vector<8x128xi32>
    %cst_6 = arith.constant 0.000000e+00 : f32
    %12 = vector.broadcast %cst_6 : f32 to vector<8x128xf32>
    %13 = arith.select %11, %8, %12 : vector<8x128xi1>, vector<8x128xf32>
    %14 = arith.mulf %13, %13 : vector<8x128xf32>
    %cst_7 = arith.constant dense<0.000000e+00> : vector<8xf32>
    %15 = vector.multi_reduction <add>, %14, %cst_7 [1] : vector<8x128xf32> to vector<8xf32>
    %16 = vector.shape_cast %15 : vector<8xf32> to vector<8x1xf32>
    %cst_8 = arith.constant 3.125000e-02 : f32
    %17 = vector.broadcast %cst_8 : f32 to vector<8x1xf32>
    %18 = arith.mulf %16, %17 : vector<8x1xf32>
    %cst_9 = arith.constant 9.99999974E-6 : f32
    %19 = vector.broadcast %cst_9 : f32 to vector<8x1xf32>
    %20 = arith.addf %18, %19 : vector<8x1xf32>
    %21 = math.rsqrt %20 : vector<8x1xf32>
    %22 = vector.broadcast %21 : vector<8x1xf32> to vector<8x128xf32>
    %23 = arith.mulf %13, %22 : vector<8x128xf32>
    %24 = vector.broadcast %1 : vector<1x128xf32> to vector<8x128xf32>
    %25 = arith.mulf %23, %24 : vector<8x128xf32>
    %26 = vector.broadcast %2 : vector<1x128xf32> to vector<8x128xf32>
    %27 = arith.addf %25, %26 : vector<8x128xf32>
    %28 = arith.truncf %27 : vector<8x128xf32> to vector<8x128xbf16>
    %c0_10 = arith.constant 0 : index
    %c0_11 = arith.constant 0 : index
    %29 = vector.load %arg4[%c0_10, %c0_11] : memref<128x128xbf16, #tpu.memory_space<vmem>>, vector<128x128xbf16>
    %cst_12 = arith.constant dense<0.000000e+00> : vector<8x128xf32>
    %30 = tpu.matmul %28, %29, %cst_12 {dimension_numbers = #tpu.dot_dimension_numbers<[1], [0], [0], [1], [0, 0, 1, 1], [], []>} : vector<8x128xbf16>, vector<128x128xbf16>, vector<8x128xf32> -> vector<8x128xf32>
    %c0_13 = arith.constant 0 : index
    %c0_14 = arith.constant 0 : index
    %31 = vector.load %arg5[%c0_13, %c0_14] : memref<1x128xf32, #tpu.memory_space<vmem>>, vector<1x128xf32>
    %32 = vector.broadcast %31 : vector<1x128xf32> to vector<8x128xf32>
    %33 = arith.addf %30, %32 : vector<8x128xf32>
    %cst_15 = arith.constant 5.000000e-01 : f32
    %34 = vector.broadcast %cst_15 : f32 to vector<8x128xf32>
    %35 = arith.mulf %34, %33 : vector<8x128xf32>
    %cst_16 = arith.constant 0.707106769 : f32
    %36 = vector.broadcast %cst_16 : f32 to vector<8x128xf32>
    %37 = arith.mulf %33, %36 : vector<8x128xf32>
    %38 = math.erf %37 : vector<8x128xf32>
    %cst_17 = arith.constant 1.000000e+00 : f32
    %39 = vector.broadcast %cst_17 : f32 to vector<8x128xf32>
    %40 = arith.addf %39, %38 : vector<8x128xf32>
    %41 = arith.mulf %35, %40 : vector<8x128xf32>
    %42 = arith.truncf %41 : vector<8x128xf32> to vector<8x128xbf16>
    %c0_18 = arith.constant 0 : index
    %c0_19 = arith.constant 0 : index
    %43 = vector.load %arg6[%c0_18, %c0_19] : memref<128x128xbf16, #tpu.memory_space<vmem>>, vector<128x128xbf16>
    %cst_20 = arith.constant dense<0.000000e+00> : vector<8x128xf32>
    %44 = tpu.matmul %42, %43, %cst_20 {dimension_numbers = #tpu.dot_dimension_numbers<[1], [0], [0], [1], [0, 0, 1, 1], [], []>} : vector<8x128xbf16>, vector<128x128xbf16>, vector<8x128xf32> -> vector<8x128xf32>
    %c0_21 = arith.constant 0 : index
    %c0_22 = arith.constant 0 : index
    %45 = vector.load %arg7[%c0_21, %c0_22] : memref<1x128xf32, #tpu.memory_space<vmem>>, vector<1x128xf32>
    %46 = vector.broadcast %45 : vector<1x128xf32> to vector<8x128xf32>
    %47 = arith.addf %44, %46 : vector<8x128xf32>
    %c0_23 = arith.constant 0 : index
    %c0_24 = arith.constant 0 : index
    %48 = vector.load %arg8[%c0_23, %c0_24] : memref<8x128xf32, #tpu.memory_space<vmem>>, vector<8x128xf32>
    tpu.vector_store %arg8[%c0_23, %c0_24], %47 {strides = array<i32>} : memref<8x128xf32, #tpu.memory_space<vmem>>, vector<8x128xf32>,
    return
  }
  func.func @transform_0(%arg0: i32) -> (i32, i32) {
    %c0_i32 = arith.constant 0 : i32
    %c0_i32_0 = arith.constant 0 : i32
    return %arg0, %c0_i32 : i32, i32
  }
  func.func @transform_1(%arg0: i32) -> (i32, i32) {
    %c0_i32 = arith.constant 0 : i32
    %c0_i32_0 = arith.constant 0 : i32
    %c0_i32_1 = arith.constant 0 : i32
    return %c0_i32, %c0_i32_0 : i32, i32
  }
  func.func @transform_2(%arg0: i32) -> (i32, i32) {
    %c0_i32 = arith.constant 0 : i32
    %c0_i32_0 = arith.constant 0 : i32
    %c0_i32_1 = arith.constant 0 : i32
    return %c0_i32, %c0_i32_0 : i32, i32
  }
  func.func @transform_3(%arg0: i32) -> (i32, i32) {
    %c0_i32 = arith.constant 0 : i32
    %c0_i32_0 = arith.constant 0 : i32
    %c0_i32_1 = arith.constant 0 : i32
    return %c0_i32, %c0_i32_0 : i32, i32
  }
  func.func @transform_4(%arg0: i32) -> (i32, i32) {
    %c0_i32 = arith.constant 0 : i32
    %c0_i32_0 = arith.constant 0 : i32
    %c0_i32_1 = arith.constant 0 : i32
    return %c0_i32, %c0_i32_0 : i32, i32
  }
  func.func @transform_5(%arg0: i32) -> (i32, i32) {
    %c0_i32 = arith.constant 0 : i32
    %c0_i32_0 = arith.constant 0 : i32
    %c0_i32_1 = arith.constant 0 : i32
    return %c0_i32, %c0_i32_0 : i32, i32
  }
  func.func @transform_6(%arg0: i32) -> (i32, i32) {
    %c0_i32 = arith.constant 0 : i32
    %c0_i32_0 = arith.constant 0 : i32
    %c0_i32_1 = arith.constant 0 : i32
    return %c0_i32, %c0_i32_0 : i32, i32
  }
  func.func @transform_7(%arg0: i32) -> (i32, i32) {
    %c0_i32 = arith.constant 0 : i32
    %c0_i32_0 = arith.constant 0 : i32
    return %arg0, %c0_i32 : i32, i32
  }
}

</mosaic_0001>

<llo_original>
// kernel: tpu_custom_call.1
$region0: #{tpu_custom_call.1}
  #allocation0 [shape = 'u32[]', space=smem, size = 0x4, offset = 0x4, fixed_abs, tag = 'smem constant byte address 0x4 - core index']
  #allocation1 [shape = 'u32[72,128]{1,0:T(1,128)}', space=vmem, size = 0x9000, scoped, tag = 'internal scratch']
  %s0 = inlined_call_operand.hbm [shape: f32[8,128], index: 0, kind: input, shape index: {}]
  %s1 = inlined_call_operand.hbm [shape: f32[8,128], index: 1, kind: output, shape index: {}]
  %s2 = sld [smem:[#allocation0]]
  $region41: #{tpu_custom_call.1} parent=0
    _
  %s4 = ssub.s32 1, %s2
  %s5 = scalar_select 0, %s4, %s2
  $region1: #{tpu_custom_call.1} parent=0
    #allocation2 [shape = 'u8[4096]{0}', space=vmem, size = 0x1000, scoped, tag = 'input window, operand 0, single buffered']
    #allocation3 [shape = 's32[2]{0}', space=sflag, size = 0x8, scoped, tag = 'scoped memory for tpu_custom_call.1']
    #allocation4 [shape = 's32[2]{0}', space=sflag, size = 0x8, scoped, tag = 'scoped memory for tpu_custom_call.1']
    #allocation5 [shape = 'u8[4096]{0}', space=vmem, size = 0x1000, scoped, tag = 'output window, operand 0, single buffered']
    %6 = vsyncpa [#allocation3], 0
    %7 = vsyncpa [#allocation4], 0
    loop: start=0, step=1, limit=4
    $region2: #{tpu_custom_call.1} parent=1 // loop_pre_header
      _
    $region3: #{tpu_custom_call.1} parent=1 // loop_header
      %s9 = sphi 0, %s13
      %p10 = scmp.ge.s32.totalorder %s9, 4
      %s17 = sphi 0, %s17
      %s19 = sphi 0, %s17
      %s20 = sphi 0, %s19
      %s34 = sphi 0, %s20
      %s38 = sphi 0, %s38
      %s40 = sphi 0, %s38
      %s41 = sphi 0, %s40
      %s55 = sphi 0, %s41
    $region4: #{tpu_custom_call.1} parent=1 // loop_header_branch
      %12 = sbr.rel (%p10) target = $region8
    $region5: #{tpu_custom_call.1} parent=1 // loop_body
      %s14 = ssub.s32 %s9, 1
      %s15 = ssub.s32 %s9, 2
      %s16 = sadd.s32 %s9, 1
      %s18 = sadd.s32 %s17, 1
      %p21 = scmp.eq.s32.totalorder %s9, 1
      %p22 = scmp.ne.s32.totalorder %s17, %s19
      %p23 = scmp.eq.s32.totalorder %s9, 0
      %p24 = por %p22, %p23
      %p25 = scmp.ne.s32.totalorder %s17, %s19
      %p26 = scmp.eq.s32.totalorder %s14, 1
      %p27 = por %p25, %p26
      %p28 = scmp.ne.s32.totalorder %s19, %s20
      %p29 = scmp.eq.s32.totalorder %s14, 0
      %p30 = por %p28, %p29
      %p31 = scmp.ne.s32.totalorder %s19, %s20
      %p32 = scmp.eq.s32.totalorder %s15, 1
      %p33 = por %p31, %p32
      %p35 = scmp.ne.s32.totalorder %s20, %s34
      %p36 = scmp.eq.s32.totalorder %s15, 0
      %p37 = por %p35, %p36
      %s39 = sadd.s32 %s38, 1
      %p42 = scmp.eq.s32.totalorder %s9, 1
      %p43 = scmp.ne.s32.totalorder %s38, %s40
      %p44 = scmp.eq.s32.totalorder %s9, 0
      %p45 = por %p43, %p44
      %p46 = scmp.ne.s32.totalorder %s38, %s40
      %p47 = scmp.eq.s32.totalorder %s14, 1
      %p48 = por %p46, %p47
      %p49 = scmp.ne.s32.totalorder %s40, %s41
      %p50 = scmp.eq.s32.totalorder %s14, 0
      %p51 = por %p49, %p50
      %p52 = scmp.ne.s32.totalorder %s40, %s41
      %p53 = scmp.eq.s32.totalorder %s15, 1
      %p54 = por %p52, %p53
      %p56 = scmp.ne.s32.totalorder %s41, %s55
      %p57 = scmp.eq.s32.totalorder %s15, 0
      %p58 = por %p56, %p57
      %p59 = scmp.le.s32.totalorder 1, %s9
      %p60 = scmp.lt.s32.totalorder %s9, 3
      %p61 = pnand %p59, %p60
      %p62 = pneg %p61
      // Predicated region
      $region9: #{tpu_custom_call.1} parent=5 // pred_check
        _
      $region10: #{tpu_custom_call.1} parent=5 // pred_check_branch
        %64 = sbr.rel (%p61) target = $region12
      $region11: #{tpu_custom_call.1} parent=5 // pred_region
        %s65 = ssub.s32 %s9, 1
        // Predicated region
        $region13: #{tpu_custom_call.1} parent=11 // pred_check
          %p66 = pneg %p30
        $region14: #{tpu_custom_call.1} parent=11 // pred_check_branch
          %68 = sbr.rel (%p66) target = $region16
        $region15: #{tpu_custom_call.1} parent=11 // pred_region
          %70 = vsyncadd [#allocation3], 0
          %s72 = sshll.u32 %s0, 4
          %s73 = int_to_ptr.hbm [resolvable:$true] %s72
          %s74 = sshll.u32 [#allocation2], 4
          %s75 = int_to_ptr.vmem [resolvable:$true] %s74
          %77 = dma.hbm_to_vmem [thread:$0]  %s73, 128, %s75, [#allocation3]
        $region16: #{tpu_custom_call.1} parent=11 // pred_fallthru
          _
      $region12: #{tpu_custom_call.1} parent=5 // pred_fallthru
        _
      %p78 = scmp.lt.s32.totalorder %s9, 2
      // Predicated region
      $region17: #{tpu_custom_call.1} parent=5 // pred_check
        %p79 = pneg %p78
      $region18: #{tpu_custom_call.1} parent=5 // pred_check_branch
        %81 = sbr.rel (%p79) target = $region20
      $region19: #{tpu_custom_call.1} parent=5 // pred_region
        _
      $region20: #{tpu_custom_call.1} parent=5 // pred_fallthru
        _
      %p82 = scmp.le.s32.totalorder 1, %s9
      %p83 = scmp.lt.s32.totalorder %s9, 3
      %p84 = pnand %p82, %p83
      %p85 = pneg %p84
      // Predicated region
      $region21: #{tpu_custom_call.1} parent=5 // pred_check
        _
      $region22: #{tpu_custom_call.1} parent=5 // pred_check_branch
        %87 = sbr.rel (%p84) target = $region24
      $region23: #{tpu_custom_call.1} parent=5 // pred_region
        %s88 = ssub.s32 %s9, 1
        // Predicated region
        $region25: #{tpu_custom_call.1} parent=23 // pred_check
          %p89 = pneg %p30
        $region26: #{tpu_custom_call.1} parent=23 // pred_check_branch
          %91 = sbr.rel (%p89) target = $region28
        $region27: #{tpu_custom_call.1} parent=23 // pred_region
          %93 = dma.done [#allocation3], 128
        $region28: #{tpu_custom_call.1} parent=23 // pred_fallthru
          _
        %p94 = pneg %p30
        %p95 = pneg %p27
        %p96 = pneg %p51
        %p97 = pneg %p48
        %v98 = vld [vmem:[#allocation2] sm:$0xff]
        %v99 = vadd.f32 %v98, 1.0
        %100 = vst [vmem:[#allocation5] sm:$0xff] %v99
        // Predicated region
        $region29: #{tpu_custom_call.1} parent=23 // pred_check
          %p101 = pneg %p48
        $region30: #{tpu_custom_call.1} parent=23 // pred_check_branch
          %103 = sbr.rel (%p101) target = $region32
        $region31: #{tpu_custom_call.1} parent=23 // pred_region
          %105 = vsyncadd [#allocation4], 0
          %s107 = sshll.u32 [#allocation5], 4
          %s108 = int_to_ptr.vmem [resolvable:$true] %s107
          %s109 = sshll.u32 %s1, 4
          %s110 = int_to_ptr.hbm [resolvable:$true] %s109
          %112 = dma.vmem_to_hbm [thread:$0]  %s108, 128, %s110, [#allocation4]
        $region32: #{tpu_custom_call.1} parent=23 // pred_fallthru
          _
        // Predicated region
        $region33: #{tpu_custom_call.1} parent=23 // pred_check
          %p113 = pneg %p48
        $region34: #{tpu_custom_call.1} parent=23 // pred_check_branch
          %115 = sbr.rel (%p113) target = $region36
        $region35: #{tpu_custom_call.1} parent=23 // pred_region
          %117 = dma.done [#allocation4], 128
        $region36: #{tpu_custom_call.1} parent=23 // pred_fallthru
          _
      $region24: #{tpu_custom_call.1} parent=5 // pred_fallthru
        _
      %p118 = scmp.le.s32.totalorder 2, %s9
      // Predicated region
      $region37: #{tpu_custom_call.1} parent=5 // pred_check
        %p119 = pneg %p118
      $region38: #{tpu_custom_call.1} parent=5 // pred_check_branch
        %121 = sbr.rel (%p119) target = $region40
      $region39: #{tpu_custom_call.1} parent=5 // pred_region
        %s122 = ssub.s32 %s9, 2
      $region40: #{tpu_custom_call.1} parent=5 // pred_fallthru
        _
    $region6: #{tpu_custom_call.1} parent=1 // loop_footer
      %s13 = sadd.s32 1, %s9
    $region7: #{tpu_custom_call.1} parent=1 // loop_footer_branch
      %8 = sbr.rel target = $region3
    $region8: #{tpu_custom_call.1} parent=1 // loop_exit
      _
    %123 = vsyncpa [#allocation3], 1
    %s124 = scalar_lea.sflag [#allocation3], 1
    %125 = vsyncpa %s124, 1
    %126 = vsyncpa [#allocation4], 1
    %s127 = scalar_lea.sflag [#allocation4], 1
    %128 = vsyncpa %s127, 1

// kernel: _ffn_call.1
$region0: #{_ffn_call.1}
  #allocation0 [shape = 'u32[]', space=smem, size = 0x4, offset = 0x4, fixed_abs, tag = 'smem constant byte address 0x4 - core index']
  #allocation1 [shape = 'u32[72,128]{1,0:T(1,128)}', space=vmem, size = 0x9000, scoped, tag = 'internal scratch']
  %s0 = inlined_call_operand.vmem [shape: f32[16,128], index: 0, kind: input, shape index: {}]
  %s1 = inlined_call_operand.vmem [shape: f32[1,128], index: 1, kind: input, shape index: {}]
  %s2 = inlined_call_operand.vmem [shape: f32[1,128], index: 2, kind: input, shape index: {}]
  %s3 = inlined_call_operand.vmem [shape: bf16[128,128], index: 3, kind: input, shape index: {}]
  %s4 = inlined_call_operand.vmem [shape: f32[1,128], index: 4, kind: input, shape index: {}]
  %s5 = inlined_call_operand.vmem [shape: bf16[128,128], index: 5, kind: input, shape index: {}]
  %s6 = inlined_call_operand.vmem [shape: f32[1,128], index: 6, kind: input, shape index: {}]
  %s7 = inlined_call_operand.vmem [shape: f32[16,128], index: 7, kind: output, shape index: {}]
  %s8 = sld [smem:[#allocation0]]
  $region61: #{_ffn_call.1} parent=0
    _
  %s10 = ssub.s32 1, %s8
  %s11 = scalar_select 0, %s10, %s8
  loop: start=0, step=1, limit=4
  $region2: #{_ffn_call.1} parent=0 // loop_pre_header
    _
  $region3: #{_ffn_call.1} parent=0 // loop_header
    %s13 = sphi 0, %s17
    %p14 = scmp.ge.s32.totalorder %s13, 4
    %s23 = sphi 0, %s25
    %s26 = sphi 0, %s23
    %s27 = sphi 0, %s26
    %s43 = sphi 0, %s27
    %s47 = sphi 0, %s47
    %s49 = sphi 0, %s47
    %s50 = sphi 0, %s49
    %s64 = sphi 0, %s50
    %s68 = sphi 0, %s68
    %s70 = sphi 0, %s68
    %s71 = sphi 0, %s70
    %s85 = sphi 0, %s71
    %s89 = sphi 0, %s89
    %s91 = sphi 0, %s89
    %s92 = sphi 0, %s91
    %s106 = sphi 0, %s92
    %s110 = sphi 0, %s110
    %s112 = sphi 0, %s110
    %s113 = sphi 0, %s112
    %s127 = sphi 0, %s113
    %s131 = sphi 0, %s131
    %s133 = sphi 0, %s131
    %s134 = sphi 0, %s133
    %s148 = sphi 0, %s134
    %s152 = sphi 0, %s152
    %s154 = sphi 0, %s152
    %s155 = sphi 0, %s154
    %s169 = sphi 0, %s155
    %s175 = sphi 0, %s177
    %s178 = sphi 0, %s175
    %s179 = sphi 0, %s178
    %s195 = sphi 0, %s179
  $region4: #{_ffn_call.1} parent=0 // loop_header_branch
    %16 = sbr.rel (%p14) target = $region8
  $region5: #{_ffn_call.1} parent=0 // loop_body
    %s18 = ssub.s32 %s13, 1
    %s19 = ssub.s32 %s13, 2
    %s20 = sadd.s32 %s13, 1
    %s21 = ssub.s32 %s13, %s20
    %p22 = scmp.eq.s32.totalorder %s21, 0
    %s24 = sadd.s32 %s23, 1
    %s25 = scalar_select %p22, %s23, %s24
    %p28 = pneg %p22
    %p29 = scmp.eq.s32.totalorder %s13, 1
    %p30 = por %p28, %p29
    %p31 = scmp.ne.s32.totalorder %s23, %s26
    %p32 = scmp.eq.s32.totalorder %s13, 0
    %p33 = por %p31, %p32
    %p34 = scmp.ne.s32.totalorder %s23, %s26
    %p35 = scmp.eq.s32.totalorder %s18, 1
    %p36 = por %p34, %p35
    %p37 = scmp.ne.s32.totalorder %s26, %s27
    %p38 = scmp.eq.s32.totalorder %s18, 0
    %p39 = por %p37, %p38
    %p40 = scmp.ne.s32.totalorder %s26, %s27
    %p41 = scmp.eq.s32.totalorder %s19, 1
    %p42 = por %p40, %p41
    %p44 = scmp.ne.s32.totalorder %s27, %s43
    %p45 = scmp.eq.s32.totalorder %s19, 0
    %p46 = por %p44, %p45
    %s48 = sadd.s32 %s47, 1
    %p51 = scmp.eq.s32.totalorder %s13, 1
    %p52 = scmp.ne.s32.totalorder %s47, %s49
    %p53 = scmp.eq.s32.totalorder %s13, 0
    %p54 = por %p52, %p53
    %p55 = scmp.ne.s32.totalorder %s47, %s49
    %p56 = scmp.eq.s32.totalorder %s18, 1
    %p57 = por %p55, %p56
    %p58 = scmp.ne.s32.totalorder %s49, %s50
    %p59 = scmp.eq.s32.totalorder %s18, 0
    %p60 = por %p58, %p59
    %p61 = scmp.ne.s32.totalorder %s49, %s50
    %p62 = scmp.eq.s32.totalorder %s19, 1
    %p63 = por %p61, %p62
    %p65 = scmp.ne.s32.totalorder %s50, %s64
    %p66 = scmp.eq.s32.totalorder %s19, 0
    %p67 = por %p65, %p66
    %s69 = sadd.s32 %s68, 1
    %p72 = scmp.eq.s32.totalorder %s13, 1
    %p73 = scmp.ne.s32.totalorder %s68, %s70
    %p74 = scmp.eq.s32.totalorder %s13, 0
    %p75 = por %p73, %p74
    %p76 = scmp.ne.s32.totalorder %s68, %s70
    %p77 = scmp.eq.s32.totalorder %s18, 1
    %p78 = por %p76, %p77
    %p79 = scmp.ne.s32.totalorder %s70, %s71
    %p80 = scmp.eq.s32.totalorder %s18, 0
    %p81 = por %p79, %p80
    %p82 = scmp.ne.s32.totalorder %s70, %s71
    %p83 = scmp.eq.s32.totalorder %s19, 1
    %p84 = por %p82, %p83
    %p86 = scmp.ne.s32.totalorder %s71, %s85
    %p87 = scmp.eq.s32.totalorder %s19, 0
    %p88 = por %p86, %p87
    %s90 = sadd.s32 %s89, 1
    %p93 = scmp.eq.s32.totalorder %s13, 1
    %p94 = scmp.ne.s32.totalorder %s89, %s91
    %p95 = scmp.eq.s32.totalorder %s13, 0
    %p96 = por %p94, %p95
    %p97 = scmp.ne.s32.totalorder %s89, %s91
    %p98 = scmp.eq.s32.totalorder %s18, 1
    %p99 = por %p97, %p98
    %p100 = scmp.ne.s32.totalorder %s91, %s92
    %p101 = scmp.eq.s32.totalorder %s18, 0
    %p102 = por %p100, %p101
    %p103 = scmp.ne.s32.totalorder %s91, %s92
    %p104 = scmp.eq.s32.totalorder %s19, 1
    %p105 = por %p103, %p104
    %p107 = scmp.ne.s32.totalorder %s92, %s106
    %p108 = scmp.eq.s32.totalorder %s19, 0
    %p109 = por %p107, %p108
    %s111 = sadd.s32 %s110, 1
    %p114 = scmp.eq.s32.totalorder %s13, 1
    %p115 = scmp.ne.s32.totalorder %s110, %s112
    %p116 = scmp.eq.s32.totalorder %s13, 0
    %p117 = por %p115, %p116
    %p118 = scmp.ne.s32.totalorder %s110, %s112
    %p119 = scmp.eq.s32.totalorder %s18, 1
    %p120 = por %p118, %p119
    %p121 = scmp.ne.s32.totalorder %s112, %s113
    %p122 = scmp.eq.s32.totalorder %s18, 0
    %p123 = por %p121, %p122
    %p124 = scmp.ne.s32.totalorder %s112, %s113
    %p125 = scmp.eq.s32.totalorder %s19, 1
    %p126 = por %p124, %p125
    %p128 = scmp.ne.s32.totalorder %s113, %s127
    %p129 = scmp.eq.s32.totalorder %s19, 0
    %p130 = por %p128, %p129
    %s132 = sadd.s32 %s131, 1
    %p135 = scmp.eq.s32.totalorder %s13, 1
    %p136 = scmp.ne.s32.totalorder %s131, %s133
    %p137 = scmp.eq.s32.totalorder %s13, 0
    %p138 = por %p136, %p137
    %p139 = scmp.ne.s32.totalorder %s131, %s133
    %p140 = scmp.eq.s32.totalorder %s18, 1
    %p141 = por %p139, %p140
    %p142 = scmp.ne.s32.totalorder %s133, %s134
    %p143 = scmp.eq.s32.totalorder %s18, 0
    %p144 = por %p142, %p143
    %p145 = scmp.ne.s32.totalorder %s133, %s134
    %p146 = scmp.eq.s32.totalorder %s19, 1
    %p147 = por %p145, %p146
    %p149 = scmp.ne.s32.totalorder %s134, %s148
    %p150 = scmp.eq.s32.totalorder %s19, 0
    %p151 = por %p149, %p150
    %s153 = sadd.s32 %s152, 1
    %p156 = scmp.eq.s32.totalorder %s13, 1
    %p157 = scmp.ne.s32.totalorder %s152, %s154
    %p158 = scmp.eq.s32.totalorder %s13, 0
    %p159 = por %p157, %p158
    %p160 = scmp.ne.s32.totalorder %s152, %s154
    %p161 = scmp.eq.s32.totalorder %s18, 1
    %p162 = por %p160, %p161
    %p163 = scmp.ne.s32.totalorder %s154, %s155
    %p164 = scmp.eq.s32.totalorder %s18, 0
    %p165 = por %p163, %p164
    %p166 = scmp.ne.s32.totalorder %s154, %s155
    %p167 = scmp.eq.s32.totalorder %s19, 1
    %p168 = por %p166, %p167
    %p170 = scmp.ne.s32.totalorder %s155, %s169
    %p171 = scmp.eq.s32.totalorder %s19, 0
    %p172 = por %p170, %p171
    %s173 = ssub.s32 %s13, %s20
    %p174 = scmp.eq.s32.totalorder %s173, 0
    %s176 = sadd.s32 %s175, 1
    %s177 = scalar_select %p174, %s175, %s176
    %p180 = pneg %p174
    %p181 = scmp.eq.s32.totalorder %s13, 1
    %p182 = por %p180, %p181
    %p183 = scmp.ne.s32.totalorder %s175, %s178
    %p184 = scmp.eq.s32.totalorder %s13, 0
    %p185 = por %p183, %p184
    %p186 = scmp.ne.s32.totalorder %s175, %s178
    %p187 = scmp.eq.s32.totalorder %s18, 1
    %p188 = por %p186, %p187
    %p189 = scmp.ne.s32.totalorder %s178, %s179
    %p190 = scmp.eq.s32.totalorder %s18, 0
    %p191 = por %p189, %p190
    %p192 = scmp.ne.s32.totalorder %s178, %s179
    %p193 = scmp.eq.s32.totalorder %s19, 1
    %p194 = por %p192, %p193
    %p196 = scmp.ne.s32.totalorder %s179, %s195
    %p197 = scmp.eq.s32.totalorder %s19, 0
    %p198 = por %p196, %p197
    %p199 = scmp.le.s32.totalorder 1, %s13
    %p200 = scmp.lt.s32.totalorder %s13, 3
    %p201 = pnand %p199, %p200
    %p202 = pneg %p201
    // Predicated region
    $region9: #{_ffn_call.1} parent=5 // pred_check
      _
    $region10: #{_ffn_call.1} parent=5 // pred_check_branch
      %204 = sbr.rel (%p201) target = $region12
    $region11: #{_ffn_call.1} parent=5 // pred_region
      %s205 = ssub.s32 %s13, 1
      // Predicated region
      $region13: #{_ffn_call.1} parent=11 // pred_check
        %p206 = pneg %p60
      $region14: #{_ffn_call.1} parent=11 // pred_check_branch
        %208 = sbr.rel (%p206) target = $region16
      $region15: #{_ffn_call.1} parent=11 // pred_region
        _
      $region16: #{_ffn_call.1} parent=11 // pred_fallthru
        _
      // Predicated region
      $region17: #{_ffn_call.1} parent=11 // pred_check
        %p209 = pneg %p81
      $region18: #{_ffn_call.1} parent=11 // pred_check_branch
        %211 = sbr.rel (%p209) target = $region20
      $region19: #{_ffn_call.1} parent=11 // pred_region
        _
      $region20: #{_ffn_call.1} parent=11 // pred_fallthru
        _
      // Predicated region
      $region21: #{_ffn_call.1} parent=11 // pred_check
        %p212 = pneg %p102
      $region22: #{_ffn_call.1} parent=11 // pred_check_branch
        %214 = sbr.rel (%p212) target = $region24
      $region23: #{_ffn_call.1} parent=11 // pred_region
        _
      $region24: #{_ffn_call.1} parent=11 // pred_fallthru
        _
      // Predicated region
      $region25: #{_ffn_call.1} parent=11 // pred_check
        %p215 = pneg %p123
      $region26: #{_ffn_call.1} parent=11 // pred_check_branch
        %217 = sbr.rel (%p215) target = $region28
      $region27: #{_ffn_call.1} parent=11 // pred_region
        _
      $region28: #{_ffn_call.1} parent=11 // pred_fallthru
        _
      // Predicated region
      $region29: #{_ffn_call.1} parent=11 // pred_check
        %p218 = pneg %p144
      $region30: #{_ffn_call.1} parent=11 // pred_check_branch
        %220 = sbr.rel (%p218) target = $region32
      $region31: #{_ffn_call.1} parent=11 // pred_region
        _
      $region32: #{_ffn_call.1} parent=11 // pred_fallthru
        _
      // Predicated region
      $region33: #{_ffn_call.1} parent=11 // pred_check
        %p221 = pneg %p165
      $region34: #{_ffn_call.1} parent=11 // pred_check_branch
        %223 = sbr.rel (%p221) target = $region36
      $region35: #{_ffn_call.1} parent=11 // pred_region
        _
      $region36: #{_ffn_call.1} parent=11 // pred_fallthru
        _
    $region12: #{_ffn_call.1} parent=5 // pred_fallthru
      _
    %p224 = scmp.lt.s32.totalorder %s13, 2
    // Predicated region
    $region37: #{_ffn_call.1} parent=5 // pred_check
      %p225 = pneg %p224
    $region38: #{_ffn_call.1} parent=5 // pred_check_branch
      %227 = sbr.rel (%p225) target = $region40
    $region39: #{_ffn_call.1} parent=5 // pred_region
      // Predicated region
      $region41: #{_ffn_call.1} parent=39 // pred_check
        %p228 = pneg %p33
      $region42: #{_ffn_call.1} parent=39 // pred_check_branch
        %230 = sbr.rel (%p228) target = $region44
      $region43: #{_ffn_call.1} parent=39 // pred_region
        %p231 = scmp.lt.s32.totalorder %s13, 1
        %s232 = scalar_select %p231, %s13, 1
        %s233 = smul.addr %s232, 8
        %s234 = scalar_lea.vmem %s0, %s233
      $region44: #{_ffn_call.1} parent=39 // pred_fallthru
        _
    $region40: #{_ffn_call.1} parent=5 // pred_fallthru
      _
    %p235 = scmp.le.s32.totalorder 1, %s13
    %p236 = scmp.lt.s32.totalorder %s13, 3
    %p237 = pnand %p235, %p236
    %p238 = pneg %p237
    // Predicated region
    $region45: #{_ffn_call.1} parent=5 // pred_check
      _
    $region46: #{_ffn_call.1} parent=5 // pred_check_branch
      %240 = sbr.rel (%p237) target = $region48
    $region47: #{_ffn_call.1} parent=5 // pred_region
      %s241 = ssub.s32 %s13, 1
      %p242 = scmp.lt.s32.totalorder %s18, 1
      %s243 = scalar_select %p242, %s18, 1
      %s244 = smul.addr %s243, 8
      %s245 = scalar_lea.vmem %s0, %s244
      %p246 = pneg %p39
      %p247 = pneg %p36
      %p248 = pneg %p60
      %p249 = pneg %p57
      %p250 = pneg %p81
      %p251 = pneg %p78
      %p252 = pneg %p102
      %p253 = pneg %p99
      %p254 = pneg %p123
      %p255 = pneg %p120
      %p256 = pneg %p144
      %p257 = pneg %p141
      %p258 = pneg %p165
      %p259 = pneg %p162
      %p260 = pneg %p191
      %p261 = pneg %p188
      %p262 = scmp.lt.s32.totalorder %s18, 1
      %s263 = scalar_select %p262, %s18, 1
      %s264 = smul.addr %s263, 8
      %s265 = scalar_lea.vmem %s7, %s264
      %p266 = scmp.lt.s32.totalorder %s18, 1
      %s267 = scalar_select %p266, %s18, 1
      %s268 = smul.addr %s267, 8
      %s269 = scalar_lea.vmem %s0, %s268
      %p270 = scmp.lt.s32.totalorder %s18, 1
      %s271 = scalar_select %p270, %s18, 1
      %s272 = smul.addr %s271, 8
      %s273 = scalar_lea.vmem %s7, %s272
      %v274 = vld [vmem:[%s269] sm:$0xff]
      %v275 = vld [vmem:[%s1] sm:$0x1]
      %v276 = vld [vmem:[%s2] sm:$0x1]
      %277 = vadd.xlane.f32.xlu0 %v274
      %v278 = vpop.xlane.xlu0 %277
      %v279 = vmul.f32 %v278, 0.03125
      %v280 = vsub.f32 %v274, %v279
      %v281 = vlaneseq
      %v282 = vand.u32 %v281, 127
      %vm283 = vcmp.lt.s32.totalorder %v282, 32
      %v284 = vsel %vm283, %v280, 0.0
      %v285 = vmul.f32 %v284, %v284
      %286 = vadd.xlane.f32.xlu0 %v285
      %v287 = vpop.xlane.xlu0 %286
      %v288 = vmul.f32 %v287, 0.03125
      %v289 = vadd.f32 %v288, 1e-05
      %v290 = vrsqrt.pop %v289
      %v291 = vmul.f32 %v290, %v289
      %v292 = vmul.f32 %v291, %v290
      %v293 = vmul.f32 0.5, %v292
      %v294 = vsub.f32 1.5, %v293
      %v295 = vmul.f32 %v290, %v294
      %vm296 = vweird.f32 %v289
      %vm297 = vweird.f32 %v290
      %vm298 = vmor %vm296, %vm297
      %v299 = vsel %vm298, %v290, %v295
      %v300 = vmul.f32 %v284, %v299
      %v302 = vperm.slane %v275, 0
      %v304 = vmul.f32 %v300, %v302
      %v306 = vperm.slane %v276, 0
      %v308 = vadd.f32 %v304, %v306
      %v309 = vpack.c.bf16 %v308, %v308
      %v310 = vld [vmem:[%s3] sm:$0xf]
      %v311 = vld [vmem:[%s3 + $0x4] sm:$0xf]
      %v312 = vld [vmem:[%s3 + $0x8] sm:$0xf]
      %v313 = vld [vmem:[%s3 + $0xc] sm:$0xf]
      %v314 = vld [vmem:[%s3 + $0x10] sm:$0xf]
      %v315 = vld [vmem:[%s3 + $0x14] sm:$0xf]
      %v316 = vld [vmem:[%s3 + $0x18] sm:$0xf]
      %v317 = vld [vmem:[%s3 + $0x1c] sm:$0xf]
      %v318 = vld [vmem:[%s3 + $0x20] sm:$0xf]
      %v319 = vld [vmem:[%s3 + $0x24] sm:$0xf]
      %v320 = vld [vmem:[%s3 + $0x28] sm:$0xf]
      %v321 = vld [vmem:[%s3 + $0x2c] sm:$0xf]
      %v322 = vld [vmem:[%s3 + $0x30] sm:$0xf]
      %v323 = vld [vmem:[%s3 + $0x34] sm:$0xf]
      %v324 = vld [vmem:[%s3 + $0x38] sm:$0xf]
      %v325 = vld [vmem:[%s3 + $0x3c] sm:$0xf]
      %v326 = vld [vmem:[%s4] sm:$0x1]
      %v328 = vperm.slane %v326, 0
      %v346 = vunpack.c.l.b16 %v310
      %v347 = vunpack.c.l.b16 %v311
      %v348 = vunpack.c.l.b16 %v312
      %v349 = vunpack.c.l.b16 %v313
      %v350 = vunpack.c.l.b16 %v314
      %v351 = vunpack.c.l.b16 %v315
      %v352 = vunpack.c.l.b16 %v316
      %v353 = vunpack.c.l.b16 %v317
      %v354 = vunpack.c.l.b16 %v318
      %v355 = vunpack.c.l.b16 %v319
      %v356 = vunpack.c.l.b16 %v320
      %v357 = vunpack.c.l.b16 %v321
      %v358 = vunpack.c.l.b16 %v322
      %v359 = vunpack.c.l.b16 %v323
      %v360 = vunpack.c.l.b16 %v324
      %v361 = vunpack.c.l.b16 %v325
      %v362 = vpack.c.b16 %v347, %v346
      %v363 = vpack.c.b16 %v349, %v348
      %v364 = vpack.c.b16 %v351, %v350
      %v365 = vpack.c.b16 %v353, %v352
      %v366 = vpack.c.b16 %v355, %v354
      %v367 = vpack.c.b16 %v357, %v356
      %v368 = vpack.c.b16 %v359, %v358
      %v369 = vpack.c.b16 %v361, %v360
      %378 = vmatpush.bf16.msra.mxu0 %v369
      %379 = vmatpush.bf16.msra.mxu0 %v368
      %380 = vmatpush.bf16.msra.mxu0 %v367
      %381 = vmatpush.bf16.msra.mxu0 %v366
      %382 = vmatpush.bf16.msra.mxu0 %v365
      %383 = vmatpush.bf16.msra.mxu0 %v364
      %384 = vmatpush.bf16.msra.mxu0 %v363
      %385 = vmatpush.bf16.msra.mxu0 %v362
      %386 = vmatmul.bf16.gmra.mxu0 %v309
      %v387 = vpop.f32.mrf.mxu0
      %v388 = vadd.f32 %v328, %v387
      %v389 = vpop.f32.mrf.mxu0
      %390 = vdwg.mxu0
      %v391 = vmul.f32 %v388, 0.5
      %v392 = vmul.f32 %v388, 0.70710677
      %v393 = vmul.f32 %v392, %v392
      %v394 = vmin.f32 16.0, %v393
      %v395 = vmul.f32 %v394, 2.1237322e-06
      %v396 = vadd.f32 %v395, 0.00028619796
      %v397 = vmul.f32 %v394, %v396
      %v398 = vadd.f32 %v397, 0.0036580483
      %v399 = vmul.f32 %v394, %v398
      %v400 = vadd.f32 %v399, 0.05243302
      %v401 = vmul.f32 %v394, %v400
      %v402 = vadd.f32 %v401, 0.18741608
      %v403 = vmul.f32 %v394, %v402
      %v404 = vadd.f32 %v403, 1.1283791
      %v405 = vmul.f32 %v392, %v404
      %v406 = vmul.f32 %v394, 3.8918573e-05
      %v407 = vadd.f32 %v406, 0.001143296
      %v408 = vmul.f32 %v394, %v407
      %v409 = vadd.f32 %v408, 0.014752088
      %v410 = vmul.f32 %v394, %v409
      %v411 = vadd.f32 %v410, 0.112945676
      %v412 = vmul.f32 %v394, %v411
      %v413 = vadd.f32 %v412, 0.4994258
      %v414 = vmul.f32 %v394, %v413
      %v415 = vadd.f32 %v414, 1.0
      %v416 = vrcp.pop %v415
      %v417 = vmul.f32 %v415, %v416
      %v418 = vsub.f32 1.0, %v417
      %v419 = vmul.f32 %v416, %v418
      %v420 = vadd.f32 %v416, %v419
      %vm421 = vweird.f32 %v415
      %vm422 = vweird.f32 %v416
      %vm423 = vmor %vm421, %vm422
      %v424 = vsel %vm423, %v416, %v420
      %v425 = vand.u32 2147483647, %v415
      %vm426 = vcmp.eq.f32.partialorder %v425, 8.507059e+37
      %v427 = vand.u32 %v415, 2147483648
      %v428 = vor.u32 1.1754944e-38, %v427
      %v429 = vsel %vm426, %v428, %v424
      %v430 = vmul.f32 %v405, %v429
      %v431 = vmin.f32 %v430, 1.0
      %v432 = vmax.f32 %v431, -1.0
      %v433 = vadd.f32 %v432, 1.0
      %v434 = vmul.f32 %v391, %v433
      %v435 = vpack.c.bf16 %v434, %v434
      %v436 = vld [vmem:[%s5] sm:$0xf]
      %v437 = vld [vmem:[%s5 + $0x4] sm:$0xf]
      %v438 = vld [vmem:[%s5 + $0x8] sm:$0xf]
      %v439 = vld [vmem:[%s5 + $0xc] sm:$0xf]
      %v440 = vld [vmem:[%s5 + $0x10] sm:$0xf]
      %v441 = vld [vmem:[%s5 + $0x14] sm:$0xf]
      %v442 = vld [vmem:[%s5 + $0x18] sm:$0xf]
      %v443 = vld [vmem:[%s5 + $0x1c] sm:$0xf]
      %v444 = vld [vmem:[%s5 + $0x20] sm:$0xf]
      %v445 = vld [vmem:[%s5 + $0x24] sm:$0xf]
      %v446 = vld [vmem:[%s5 + $0x28] sm:$0xf]
      %v447 = vld [vmem:[%s5 + $0x2c] sm:$0xf]
      %v448 = vld [vmem:[%s5 + $0x30] sm:$0xf]
      %v449 = vld [vmem:[%s5 + $0x34] sm:$0xf]
      %v450 = vld [vmem:[%s5 + $0x38] sm:$0xf]
      %v451 = vld [vmem:[%s5 + $0x3c] sm:$0xf]
      %v452 = vld [vmem:[%s6] sm:$0x1]
      %v454 = vperm.slane %v452, 0
      %v472 = vunpack.c.l.b16 %v436
      %v473 = vunpack.c.l.b16 %v437
      %v474 = vunpack.c.l.b16 %v438
      %v475 = vunpack.c.l.b16 %v439
      %v476 = vunpack.c.l.b16 %v440
      %v477 = vunpack.c.l.b16 %v441
      %v478 = vunpack.c.l.b16 %v442
      %v479 = vunpack.c.l.b16 %v443
      %v480 = vunpack.c.l.b16 %v444
      %v481 = vunpack.c.l.b16 %v445
      %v482 = vunpack.c.l.b16 %v446
      %v483 = vunpack.c.l.b16 %v447
      %v484 = vunpack.c.l.b16 %v448
      %v485 = vunpack.c.l.b16 %v449
      %v486 = vunpack.c.l.b16 %v450
      %v487 = vunpack.c.l.b16 %v451
      %v488 = vpack.c.b16 %v473, %v472
      %v489 = vpack.c.b16 %v475, %v474
      %v490 = vpack.c.b16 %v477, %v476
      %v491 = vpack.c.b16 %v479, %v478
      %v492 = vpack.c.b16 %v481, %v480
      %v493 = vpack.c.b16 %v483, %v482
      %v494 = vpack.c.b16 %v485, %v484
      %v495 = vpack.c.b16 %v487, %v486
      %504 = vmatpush.bf16.msra.mxu0 %v495
      %505 = vmatpush.bf16.msra.mxu0 %v494
      %506 = vmatpush.bf16.msra.mxu0 %v493
      %507 = vmatpush.bf16.msra.mxu0 %v492
      %508 = vmatpush.bf16.msra.mxu0 %v491
      %509 = vmatpush.bf16.msra.mxu0 %v490
      %510 = vmatpush.bf16.msra.mxu0 %v489
      %511 = vmatpush.bf16.msra.mxu0 %v488
      %512 = vmatmul.bf16.gmra.mxu0 %v435
      %v513 = vpop.f32.mrf.mxu0
      %v514 = vadd.f32 %v454, %v513
      %v515 = vpop.f32.mrf.mxu0
      %516 = vdwg.mxu0
      %517 = vst [vmem:[%s273] sm:$0xff] %v514
      %p518 = scmp.lt.s32.totalorder %s18, 1
      %s519 = scalar_select %p518, %s18, 1
      %s520 = smul.addr %s519, 8
      %s521 = scalar_lea.vmem %s7, %s520
      // Predicated region
      $region49: #{_ffn_call.1} parent=47 // pred_check
        %p522 = pneg %p188
      $region50: #{_ffn_call.1} parent=47 // pred_check_branch
        %524 = sbr.rel (%p522) target = $region52
      $region51: #{_ffn_call.1} parent=47 // pred_region
        _
      $region52: #{_ffn_call.1} parent=47 // pred_fallthru
        _
    $region48: #{_ffn_call.1} parent=5 // pred_fallthru
      _
    %p525 = scmp.le.s32.totalorder 2, %s13
    // Predicated region
    $region53: #{_ffn_call.1} parent=5 // pred_check
      %p526 = pneg %p525
    $region54: #{_ffn_call.1} parent=5 // pred_check_branch
      %528 = sbr.rel (%p526) target = $region56
    $region55: #{_ffn_call.1} parent=5 // pred_region
      %s529 = ssub.s32 %s13, 2
      // Predicated region
      $region57: #{_ffn_call.1} parent=55 // pred_check
        %p530 = pneg %p194
      $region58: #{_ffn_call.1} parent=55 // pred_check_branch
        %532 = sbr.rel (%p530) target = $region60
      $region59: #{_ffn_call.1} parent=55 // pred_region
        %p533 = scmp.lt.s32.totalorder %s19, 1
        %s534 = scalar_select %p533, %s19, 1
        %s535 = smul.addr %s534, 8
        %s536 = scalar_lea.vmem %s7, %s535
      $region60: #{_ffn_call.1} parent=55 // pred_fallthru
        _
    $region56: #{_ffn_call.1} parent=5 // pred_fallthru
      _
  $region6: #{_ffn_call.1} parent=0 // loop_footer
    %s17 = sadd.s32 1, %s13
  $region7: #{_ffn_call.1} parent=0 // loop_footer_branch
    %12 = sbr.rel target = $region3
  $region8: #{_ffn_call.1} parent=0 // loop_exit
    _

</llo_original>
